<compile_context>
chip_gen: v5e
topology: v5e:2x2
jax: 0.10.0
libtpu: 0.0.40
codegen_flags: <defaults>
</compile_context>

<pallas_src>
import functools

import jax
import jax.numpy as jnp
import numpy as np
from jax import lax
from jax.experimental import pallas as pl
from jax.experimental.pallas import tpu as pltpu


def _round_up(x, m):
    return ((x + m - 1) // m) * m


def _segmenter_kernel(x_ref, xh_ref, w1_ref, b1_ref, w2_ref, b2_ref, out_ref,
                      *, tile_p, w_pad):
    """One pixel tile: fused 3x3 conv + bias + ReLU + 1x1 conv + bias.

    x_ref:   (Cinp, TILE_P)   bf16  current block of flattened padded pixels
    xh_ref:  (Cinp, HALO)     bf16  first HALO pixels of the next block
    w1_ref:  (C1p, 9*Cinp)    f32   3x3 weights, tap-major / channel-minor
    b1_ref:  (C1p, 1)         f32
    w2_ref:  (C2p, C1p)       f32   1x1 decoder weights
    b2_ref:  (C2p, 1)         f32
    out_ref: (C2p, TILE_P)    f32   class logits (classes in sublanes)
    """
    # Current tile + aligned halo; upcast once to f32 (mem-bound kernel, f32
    # keeps every relayout on the native (8,128) tiling).
    slab = jnp.concatenate([x_ref[...], xh_ref[...]], axis=-1)
    slab = slab.astype(jnp.float32)                     # (Cinp, TILE_P + HALO)

    # 3x3 conv == one matmul over K = 9*Cinp: stack the 9 statically shifted
    # pixel windows along sublanes (offsets are multiples of Cinp -> aligned).
    taps = [slab[:, kh * w_pad + kw: kh * w_pad + kw + tile_p]
            for kh in range(3) for kw in range(3)]
    x9 = jnp.concatenate(taps, axis=0)                  # (9*Cinp, TILE_P)

    hidden = jnp.dot(w1_ref[...], x9, preferred_element_type=jnp.float32)
    hidden = jnp.maximum(hidden + b1_ref[...], 0.0)     # (C1p, TILE_P)

    logits = jnp.dot(w2_ref[...], hidden, preferred_element_type=jnp.float32)
    out_ref[...] = (logits + b2_ref[...]).astype(out_ref.dtype)


@functools.partial(jax.jit, static_argnames=("num_classes",))
def segmenter_forward(x_nchw, w1, b1, w2, b2, *, num_classes):
    """x_nchw: (N, Cin, H, W) f32.  Returns (N, num_classes, H, W) f32."""
    n, cin, h, w = x_nchw.shape
    c1 = w1.shape[0]
    c2 = num_classes

    cinp = _round_up(max(cin, 8), 8)      # input channels, sublane aligned
    c1p = _round_up(max(c1, 8), 8)        # hidden channels, sublane aligned
    c2p = _round_up(max(c2, 8), 8)        # class channels, sublane aligned

    w_pad = w + 2                         # padded image width
    n_wide = h * w_pad                    # kept "wide" outputs (incl. 2 pad cols)
    halo = _round_up(2 * w_pad + 2, 128)  # 3x3 look-ahead, lane aligned
    tile_p = max(halo, (512 // halo) * halo)       # ~512 pixel lanes per step
    tile_p = min(tile_p, _round_up(n_wide, halo))  # no bigger than the image
    n_tiles = -(-n_wide // tile_p)
    n_wide_p = n_tiles * tile_p
    p_len = n_wide_p + halo               # flattened, zero-padded pixel count

    # ---- glue (no FLOPs): spatial zero-pad, channel pad, flatten, cast ----
    xp = jnp.pad(x_nchw, ((0, 0), (0, cinp - cin), (1, 1), (1, 1)))
    xf = xp.reshape(n, cinp, (h + 2) * w_pad).astype(jnp.bfloat16)
    xf = jnp.pad(xf, ((0, 0), (0, 0), (0, p_len - (h + 2) * w_pad)))

    # PyTorch Conv2d weights (O, I, KH, KW) -> (C1p, 9*Cinp), tap-major /
    # channel-minor; zero padding -> padded rows/cols contribute exactly zero.
    w1_f = jnp.transpose(w1, (0, 2, 3, 1))                       # (C1, 3, 3, Cin)
    w1_f = jnp.pad(w1_f, ((0, c1p - c1), (0, 0), (0, 0), (0, cinp - cin)))
    w1_f = w1_f.reshape(c1p, 9 * cinp).astype(jnp.float32)
    b1_f = jnp.pad(b1, (0, c1p - c1)).reshape(c1p, 1).astype(jnp.float32)
    w2_f = jnp.pad(w2.reshape(c2, c1), ((0, c2p - c2), (0, c1p - c1)))
    w2_f = w2_f.astype(jnp.float32)
    b2_f = jnp.pad(b2, (0, c2p - c2)).reshape(c2p, 1).astype(jnp.float32)

    kernel = functools.partial(_segmenter_kernel, tile_p=tile_p, w_pad=w_pad)

    flops = 2 * n * n_wide_p * (9 * cinp * c1p + c1p * c2p)
    bytes_accessed = (n * cinp * (p_len + n_tiles * halo) * 2     # input + halo re-read
                      + (w1_f.size + w2_f.size + b1_f.size + b2_f.size) * 4
                      + n * c2p * n_wide_p * 4)                   # logits
    # Per-step VMEM footprint: double-buffered blocks + weights + temporaries.
    step_bytes = (2 * (cinp * (tile_p + halo) * 2 + c2p * tile_p * 4)
                  + (9 * cinp + c2p + 2) * c1p * 4
                  + (10 * cinp + c1p + c2p) * tile_p * 4)
    vmem_limit = int(min(48 * 2 ** 20, max(8 * 2 ** 20, 2 * step_bytes)))

    halo_step = tile_p // halo            # halo block index stride (static)

    # ---- Pallas hot path: all matmuls, bias adds and the ReLU ----
    out_wide = pl.pallas_call(
        kernel,
        out_shape=jax.ShapeDtypeStruct((n, c2p, n_wide_p), jnp.float32),
        grid_spec=pltpu.PrefetchScalarGridSpec(
            num_scalar_prefetch=0,
            grid=(n, n_tiles),
            in_specs=[
                # current pixel block (pixels in lanes, channels in sublanes)
                pl.BlockSpec((None, cinp, tile_p), lambda b, t: (b, 0, t)),
                # aligned halo = first `halo` pixels of the next block
                pl.BlockSpec((None, cinp, halo),
                             lambda b, t: (b, 0, (t + 1) * halo_step)),
                pl.BlockSpec((c1p, 9 * cinp), lambda b, t: (0, 0)),
                pl.BlockSpec((c1p, 1), lambda b, t: (0, 0)),
                pl.BlockSpec((c2p, c1p), lambda b, t: (0, 0)),
                pl.BlockSpec((c2p, 1), lambda b, t: (0, 0)),
            ],
            out_specs=pl.BlockSpec((None, c2p, tile_p), lambda b, t: (b, 0, t)),
        ),
        compiler_params=pltpu.CompilerParams(
            dimension_semantics=("parallel", "parallel"),
            vmem_limit_bytes=vmem_limit),
        cost_estimate=pl.CostEstimate(flops=flops, transcendentals=0,
                                      bytes_accessed=bytes_accessed),
    )(xf, xf, w1_f, b1_f, w2_f, b2_f)

    # ---- glue: slice classes FIRST, then drop the 2 padded columns ----
    out = out_wide[:, :c2, :n_wide].reshape(n, c2, h, w_pad)
    return out[:, :, :, :w]


def _reference_forward(x_nchw, w1, b1, w2, b2):
    """Pure-JAX reference mirroring the PyTorch Segmenter(encoder, decoder)."""
    y = lax.conv_general_dilated(
        x_nchw, w1, window_strides=(1, 1), padding="SAME",
        dimension_numbers=("NCHW", "OIHW", "NCHW"))
    y = jnp.maximum(y + b1.reshape(1, -1, 1, 1), 0.0)
    z = lax.conv_general_dilated(
        y, w2, window_strides=(1, 1), padding="VALID",
        dimension_numbers=("NCHW", "OIHW", "NCHW"))
    return z + b2.reshape(1, -1, 1, 1)


if __name__ == "__main__":
    # Small deterministic setup.
    N, CIN, H, W = 2, 4, 16, 16
    C1, NUM_CLASSES = 8, 3

    key = jax.random.PRNGKey(0)
    k_x, k_w1, k_b1, k_w2, k_b2 = jax.random.split(key, 5)

    x = jax.random.normal(k_x, (N, CIN, H, W), dtype=jnp.float32)
    # PyTorch Conv2d weight layout: (O, I, KH, KW).
    w1 = jax.random.normal(k_w1, (C1, CIN, 3, 3), dtype=jnp.float32) * 0.1
    b1 = jax.random.normal(k_b1, (C1,), dtype=jnp.float32) * 0.1
    w2 = jax.random.normal(k_w2, (NUM_CLASSES, C1, 1, 1), dtype=jnp.float32) * 0.1
    b2 = jax.random.normal(k_b2, (NUM_CLASSES,), dtype=jnp.float32) * 0.1

    out = jax.block_until_ready(
        segmenter_forward(x, w1, b1, w2, b2, num_classes=NUM_CLASSES))
    ref = jax.block_until_ready(_reference_forward(x, w1, b1, w2, b2))

    assert out.shape == (N, NUM_CLASSES, H, W), out.shape
    # Only the HBM input is bf16 (all kernel math in f32) -> tight tolerance.
    np.testing.assert_allclose(np.asarray(out), np.asarray(ref),
                               rtol=1e-2, atol=1e-2)

    print("KERNEL_OK")
</pallas_src>

<mosaic_0001>
module attributes {stable_mosaic.version = 11 : i64} {
  func.func @_segmenter_kernel(%arg0: i32, %arg1: i32, %arg2: memref<1x8x384xbf16, #tpu.memory_space<vmem>>, %arg3: memref<1x8x128xbf16, #tpu.memory_space<vmem>>, %arg4: memref<8x72xf32, #tpu.memory_space<vmem>>, %arg5: memref<8x1xf32, #tpu.memory_space<vmem>>, %arg6: memref<8x8xf32, #tpu.memory_space<vmem>>, %arg7: memref<8x1xf32, #tpu.memory_space<vmem>>, %arg8: memref<1x8x384xf32, #tpu.memory_space<vmem>>) attributes {dimension_semantics = [#tpu.dimension_semantics<parallel>, #tpu.dimension_semantics<parallel>], iteration_bounds = array<i64: 2, 1>, scalar_prefetch = 0 : i64, scratch_operands = 0 : i64, tpu.core_type = #tpu.core_type<tc>, window_params = [{transform_indices = @transform_0, window_bounds = array<i64: 1, 8, 384>}, {transform_indices = @transform_1, window_bounds = array<i64: 1, 8, 128>}, {pipeline_mode = #tpu.pipeline_mode<synchronous>, transform_indices = @transform_2, window_bounds = array<i64: 8, 72>}, {pipeline_mode = #tpu.pipeline_mode<synchronous>, transform_indices = @transform_3, window_bounds = array<i64: 8, 1>}, {pipeline_mode = #tpu.pipeline_mode<synchronous>, transform_indices = @transform_4, window_bounds = array<i64: 8, 8>}, {pipeline_mode = #tpu.pipeline_mode<synchronous>, transform_indices = @transform_5, window_bounds = array<i64: 8, 1>}, {transform_indices = @transform_6, window_bounds = array<i64: 1, 8, 384>}]} {
    %c0 = arith.constant 0 : index
    %c0_0 = arith.constant 0 : index
    %c0_1 = arith.constant 0 : index
    %0 = vector.load %arg2[%c0, %c0_0, %c0_1] : memref<1x8x384xbf16, #tpu.memory_space<vmem>>, vector<1x8x384xbf16>
    %1 = vector.shape_cast %0 : vector<1x8x384xbf16> to vector<8x384xbf16>
    %c0_2 = arith.constant 0 : index
    %c0_3 = arith.constant 0 : index
    %c0_4 = arith.constant 0 : index
    %2 = vector.load %arg3[%c0_2, %c0_3, %c0_4] : memref<1x8x128xbf16, #tpu.memory_space<vmem>>, vector<1x8x128xbf16>
    %3 = vector.shape_cast %2 : vector<1x8x128xbf16> to vector<8x128xbf16>
    %4 = tpu.concatenate %1, %3 in 1 : vector<8x384xbf16>, vector<8x128xbf16> -> vector<8x512xbf16>
    %5 = arith.extf %4 : vector<8x512xbf16> to vector<8x512xf32>
    %6 = vector.extract_strided_slice %5 {offsets = [0, 0], sizes = [8, 384], strides = [1, 1]} : vector<8x512xf32> to vector<8x384xf32>
    %7 = vector.extract_strided_slice %5 {offsets = [0, 1], sizes = [8, 384], strides = [1, 1]} : vector<8x512xf32> to vector<8x384xf32>
    %8 = vector.extract_strided_slice %5 {offsets = [0, 2], sizes = [8, 384], strides = [1, 1]} : vector<8x512xf32> to vector<8x384xf32>
    %9 = vector.extract_strided_slice %5 {offsets = [0, 18], sizes = [8, 384], strides = [1, 1]} : vector<8x512xf32> to vector<8x384xf32>
    %10 = vector.extract_strided_slice %5 {offsets = [0, 19], sizes = [8, 384], strides = [1, 1]} : vector<8x512xf32> to vector<8x384xf32>
    %11 = vector.extract_strided_slice %5 {offsets = [0, 20], sizes = [8, 384], strides = [1, 1]} : vector<8x512xf32> to vector<8x384xf32>
    %12 = vector.extract_strided_slice %5 {offsets = [0, 36], sizes = [8, 384], strides = [1, 1]} : vector<8x512xf32> to vector<8x384xf32>
    %13 = vector.extract_strided_slice %5 {offsets = [0, 37], sizes = [8, 384], strides = [1, 1]} : vector<8x512xf32> to vector<8x384xf32>
    %14 = vector.extract_strided_slice %5 {offsets = [0, 38], sizes = [8, 384], strides = [1, 1]} : vector<8x512xf32> to vector<8x384xf32>
    %15 = tpu.concatenate %6, %7, %8, %9, %10, %11, %12, %13, %14 in 0 : vector<8x384xf32>, vector<8x384xf32>, vector<8x384xf32>, vector<8x384xf32>, vector<8x384xf32>, vector<8x384xf32>, vector<8x384xf32>, vector<8x384xf32>, vector<8x384xf32> -> vector<72x384xf32>
    %c0_5 = arith.constant 0 : index
    %c0_6 = arith.constant 0 : index
    %16 = vector.load %arg4[%c0_5, %c0_6] : memref<8x72xf32, #tpu.memory_space<vmem>>, vector<8x72xf32>
    %cst = arith.constant dense<0.000000e+00> : vector<8x384xf32>
    %17 = tpu.matmul %16, %15, %cst {dimension_numbers = #tpu.dot_dimension_numbers<[1], [0], [0], [1], [0, 0, 1, 1], [], []>} : vector<8x72xf32>, vector<72x384xf32>, vector<8x384xf32> -> vector<8x384xf32>
    %c0_7 = arith.constant 0 : index
    %c0_8 = arith.constant 0 : index
    %18 = vector.load %arg5[%c0_7, %c0_8] : memref<8x1xf32, #tpu.memory_space<vmem>>, vector<8x1xf32>
    %19 = vector.broadcast %18 : vector<8x1xf32> to vector<8x384xf32>
    %20 = arith.addf %17, %19 : vector<8x384xf32>
    %cst_9 = arith.constant 0.000000e+00 : f32
    %21 = vector.broadcast %cst_9 : f32 to vector<8x384xf32>
    %22 = arith.maximumf %20, %21 : vector<8x384xf32>
    %c0_10 = arith.constant 0 : index
    %c0_11 = arith.constant 0 : index
    %23 = vector.load %arg6[%c0_10, %c0_11] : memref<8x8xf32, #tpu.memory_space<vmem>>, vector<8x8xf32>
    %cst_12 = arith.constant dense<0.000000e+00> : vector<8x384xf32>
    %24 = tpu.matmul %23, %22, %cst_12 {dimension_numbers = #tpu.dot_dimension_numbers<[1], [0], [0], [1], [0, 0, 1, 1], [], []>} : vector<8x8xf32>, vector<8x384xf32>, vector<8x384xf32> -> vector<8x384xf32>
    %c0_13 = arith.constant 0 : index
    %c0_14 = arith.constant 0 : index
    %25 = vector.load %arg7[%c0_13, %c0_14] : memref<8x1xf32, #tpu.memory_space<vmem>>, vector<8x1xf32>
    %26 = vector.broadcast %25 : vector<8x1xf32> to vector<8x384xf32>
    %27 = arith.addf %24, %26 : vector<8x384xf32>
    %c0_15 = arith.constant 0 : index
    %c0_16 = arith.constant 0 : index
    %c0_17 = arith.constant 0 : index
    %28 = vector.load %arg8[%c0_15, %c0_16, %c0_17] : memref<1x8x384xf32, #tpu.memory_space<vmem>>, vector<1x8x384xf32>
    %29 = vector.shape_cast %28 : vector<1x8x384xf32> to vector<8x384xf32>
    %30 = vector.shape_cast %27 : vector<8x384xf32> to vector<1x8x384xf32>
    tpu.vector_store %arg8[%c0_15, %c0_16, %c0_17], %30 {strides = array<i32>} : memref<1x8x384xf32, #tpu.memory_space<vmem>>, vector<1x8x384xf32>,
    return
  }
  func.func @transform_0(%arg0: i32, %arg1: i32) -> (i32, i32, i32) {
    %c0_i32 = arith.constant 0 : i32
    %c0_i32_0 = arith.constant 0 : i32
    return %arg0, %c0_i32, %arg1 : i32, i32, i32
  }
  func.func @transform_1(%arg0: i32, %arg1: i32) -> (i32, i32, i32) {
    %c1_i32 = arith.constant 1 : i32
    %0 = arith.addi %arg1, %c1_i32 : i32
    %c3_i32 = arith.constant 3 : i32
    %1 = arith.muli %0, %c3_i32 : i32
    %c0_i32 = arith.constant 0 : i32
    %c0_i32_0 = arith.constant 0 : i32
    return %arg0, %c0_i32, %1 : i32, i32, i32
  }
  func.func @transform_2(%arg0: i32, %arg1: i32) -> (i32, i32) {
    %c0_i32 = arith.constant 0 : i32
    %c0_i32_0 = arith.constant 0 : i32
    %c0_i32_1 = arith.constant 0 : i32
    return %c0_i32, %c0_i32_0 : i32, i32
  }
  func.func @transform_3(%arg0: i32, %arg1: i32) -> (i32, i32) {
    %c0_i32 = arith.constant 0 : i32
    %c0_i32_0 = arith.constant 0 : i32
    %c0_i32_1 = arith.constant 0 : i32
    return %c0_i32, %c0_i32_0 : i32, i32
  }
  func.func @transform_4(%arg0: i32, %arg1: i32) -> (i32, i32) {
    %c0_i32 = arith.constant 0 : i32
    %c0_i32_0 = arith.constant 0 : i32
    %c0_i32_1 = arith.constant 0 : i32
    return %c0_i32, %c0_i32_0 : i32, i32
  }
  func.func @transform_5(%arg0: i32, %arg1: i32) -> (i32, i32) {
    %c0_i32 = arith.constant 0 : i32
    %c0_i32_0 = arith.constant 0 : i32
    %c0_i32_1 = arith.constant 0 : i32
    return %c0_i32, %c0_i32_0 : i32, i32
  }
  func.func @transform_6(%arg0: i32, %arg1: i32) -> (i32, i32, i32) {
    %c0_i32 = arith.constant 0 : i32
    %c0_i32_0 = arith.constant 0 : i32
    return %arg0, %c0_i32, %arg1 : i32, i32, i32
  }
}

</mosaic_0001>

<llo_original>
// kernel: segmenter_forward.1
$region0: #{segmenter_forward.1}
  #allocation0 [shape = 'u32[]', space=smem, size = 0x4, offset = 0x4, fixed_abs, tag = 'smem constant byte address 0x4 - core index']
  #allocation1 [shape = 'u32[72,128]{1,0:T(1,128)}', space=vmem, size = 0x9000, scoped, tag = 'internal scratch']
  %s0 = inlined_call_operand.vmem [shape: bf16[2,8,512], index: 0, kind: input, shape index: {}, may-alias: {0,1}]
  %s1 = inlined_call_operand.vmem [shape: bf16[2,8,512], index: 1, kind: input, shape index: {}, may-alias: {0,1}]
  %s2 = inlined_call_operand.vmem [shape: f32[8,72], index: 2, kind: input, shape index: {}]
  %s3 = inlined_call_operand.vmem [shape: f32[8,1], index: 3, kind: input, shape index: {}]
  %s4 = inlined_call_operand.vmem [shape: f32[8,8], index: 4, kind: input, shape index: {}]
  %s5 = inlined_call_operand.vmem [shape: f32[8,1], index: 5, kind: input, shape index: {}]
  %s6 = inlined_call_operand.vmem [shape: f32[2,8,384], index: 6, kind: output, shape index: {}]
  %s7 = sld [smem:[#allocation0]]
  $region57: #{segmenter_forward.1} parent=0
    _
  %s9 = ssub.s32 1, %s7
  %s10 = scalar_select 0, %s9, %s7
  loop: start=0, step=1, limit=4
  $region2: #{segmenter_forward.1} parent=0 // loop_pre_header
    _
  $region3: #{segmenter_forward.1} parent=0 // loop_header
    %s12 = sphi 0, %s16
    %p13 = scmp.ge.s32.totalorder %s12, 4
    %s19 = sphi 0, %s31
    %s20 = sphi 0, %s27
    %s21 = sphi 0, %s19
    %s22 = sphi 0, %s20
    %s23 = sphi 0, %s21
    %s24 = sphi 0, %s22
    %s36 = sphi 0, %s38
    %s39 = sphi 0, %s36
    %s40 = sphi 0, %s39
    %s56 = sphi 0, %s40
    %s68 = sphi 0, %s70
    %s71 = sphi 0, %s68
    %s72 = sphi 0, %s71
    %s88 = sphi 0, %s72
    %s92 = sphi 0, %s92
    %s94 = sphi 0, %s92
    %s95 = sphi 0, %s94
    %s109 = sphi 0, %s95
    %s113 = sphi 0, %s113
    %s115 = sphi 0, %s113
    %s116 = sphi 0, %s115
    %s130 = sphi 0, %s116
    %s134 = sphi 0, %s134
    %s136 = sphi 0, %s134
    %s137 = sphi 0, %s136
    %s151 = sphi 0, %s137
    %s155 = sphi 0, %s155
    %s157 = sphi 0, %s155
    %s158 = sphi 0, %s157
    %s172 = sphi 0, %s158
    %s180 = sphi 0, %s182
    %s183 = sphi 0, %s180
    %s184 = sphi 0, %s183
    %s200 = sphi 0, %s184
  $region4: #{segmenter_forward.1} parent=0 // loop_header_branch
    %15 = sbr.rel (%p13) target = $region8
  $region5: #{segmenter_forward.1} parent=0 // loop_body
    %s17 = ssub.s32 %s12, 1
    %s18 = ssub.s32 %s12, 2
    %s25 = sadd.s32 1, %s20
    %p26 = scmp.ge.s32.totalorder %s25, 1
    %s27 = scalar_select %p26, 0, %s25
    %s28 = sadd.s32 1, %s19
    %s29 = scalar_select %p26, %s28, %s19
    %p30 = scmp.ge.s32.totalorder %s29, 2
    %s31 = scalar_select %p30, 0, %s29
    %s32 = ssub.s32 %s19, %s31
    %s33 = ssub.s32 %s20, %s27
    %s34 = sor.u32 %s32, %s33
    %p35 = scmp.eq.s32.totalorder %s34, 0
    %s37 = sadd.s32 %s36, 1
    %s38 = scalar_select %p35, %s36, %s37
    %p41 = pneg %p35
    %p42 = scmp.eq.s32.totalorder %s12, 1
    %p43 = por %p41, %p42
    %p44 = scmp.ne.s32.totalorder %s36, %s39
    %p45 = scmp.eq.s32.totalorder %s12, 0
    %p46 = por %p44, %p45
    %p47 = scmp.ne.s32.totalorder %s36, %s39
    %p48 = scmp.eq.s32.totalorder %s17, 1
    %p49 = por %p47, %p48
    %p50 = scmp.ne.s32.totalorder %s39, %s40
    %p51 = scmp.eq.s32.totalorder %s17, 0
    %p52 = por %p50, %p51
    %p53 = scmp.ne.s32.totalorder %s39, %s40
    %p54 = scmp.eq.s32.totalorder %s18, 1
    %p55 = por %p53, %p54
    %p57 = scmp.ne.s32.totalorder %s40, %s56
    %p58 = scmp.eq.s32.totalorder %s18, 0
    %p59 = por %p57, %p58
    %s60 = sadd.s32 %s20, 1
    %s61 = smul.u32 %s60, 3
    %s62 = sadd.s32 %s27, 1
    %s63 = smul.u32 %s62, 3
    %s64 = ssub.s32 %s19, %s31
    %s65 = ssub.s32 %s61, %s63
    %s66 = sor.u32 %s64, %s65
    %p67 = scmp.eq.s32.totalorder %s66, 0
    %s69 = sadd.s32 %s68, 1
    %s70 = scalar_select %p67, %s68, %s69
    %p73 = pneg %p67
    %p74 = scmp.eq.s32.totalorder %s12, 1
    %p75 = por %p73, %p74
    %p76 = scmp.ne.s32.totalorder %s68, %s71
    %p77 = scmp.eq.s32.totalorder %s12, 0
    %p78 = por %p76, %p77
    %p79 = scmp.ne.s32.totalorder %s68, %s71
    %p80 = scmp.eq.s32.totalorder %s17, 1
    %p81 = por %p79, %p80
    %p82 = scmp.ne.s32.totalorder %s71, %s72
    %p83 = scmp.eq.s32.totalorder %s17, 0
    %p84 = por %p82, %p83
    %p85 = scmp.ne.s32.totalorder %s71, %s72
    %p86 = scmp.eq.s32.totalorder %s18, 1
    %p87 = por %p85, %p86
    %p89 = scmp.ne.s32.totalorder %s72, %s88
    %p90 = scmp.eq.s32.totalorder %s18, 0
    %p91 = por %p89, %p90
    %s93 = sadd.s32 %s92, 1
    %p96 = scmp.eq.s32.totalorder %s12, 1
    %p97 = scmp.ne.s32.totalorder %s92, %s94
    %p98 = scmp.eq.s32.totalorder %s12, 0
    %p99 = por %p97, %p98
    %p100 = scmp.ne.s32.totalorder %s92, %s94
    %p101 = scmp.eq.s32.totalorder %s17, 1
    %p102 = por %p100, %p101
    %p103 = scmp.ne.s32.totalorder %s94, %s95
    %p104 = scmp.eq.s32.totalorder %s17, 0
    %p105 = por %p103, %p104
    %p106 = scmp.ne.s32.totalorder %s94, %s95
    %p107 = scmp.eq.s32.totalorder %s18, 1
    %p108 = por %p106, %p107
    %p110 = scmp.ne.s32.totalorder %s95, %s109
    %p111 = scmp.eq.s32.totalorder %s18, 0
    %p112 = por %p110, %p111
    %s114 = sadd.s32 %s113, 1
    %p117 = scmp.eq.s32.totalorder %s12, 1
    %p118 = scmp.ne.s32.totalorder %s113, %s115
    %p119 = scmp.eq.s32.totalorder %s12, 0
    %p120 = por %p118, %p119
    %p121 = scmp.ne.s32.totalorder %s113, %s115
    %p122 = scmp.eq.s32.totalorder %s17, 1
    %p123 = por %p121, %p122
    %p124 = scmp.ne.s32.totalorder %s115, %s116
    %p125 = scmp.eq.s32.totalorder %s17, 0
    %p126 = por %p124, %p125
    %p127 = scmp.ne.s32.totalorder %s115, %s116
    %p128 = scmp.eq.s32.totalorder %s18, 1
    %p129 = por %p127, %p128
    %p131 = scmp.ne.s32.totalorder %s116, %s130
    %p132 = scmp.eq.s32.totalorder %s18, 0
    %p133 = por %p131, %p132
    %s135 = sadd.s32 %s134, 1
    %p138 = scmp.eq.s32.totalorder %s12, 1
    %p139 = scmp.ne.s32.totalorder %s134, %s136
    %p140 = scmp.eq.s32.totalorder %s12, 0
    %p141 = por %p139, %p140
    %p142 = scmp.ne.s32.totalorder %s134, %s136
    %p143 = scmp.eq.s32.totalorder %s17, 1
    %p144 = por %p142, %p143
    %p145 = scmp.ne.s32.totalorder %s136, %s137
    %p146 = scmp.eq.s32.totalorder %s17, 0
    %p147 = por %p145, %p146
    %p148 = scmp.ne.s32.totalorder %s136, %s137
    %p149 = scmp.eq.s32.totalorder %s18, 1
    %p150 = por %p148, %p149
    %p152 = scmp.ne.s32.totalorder %s137, %s151
    %p153 = scmp.eq.s32.totalorder %s18, 0
    %p154 = por %p152, %p153
    %s156 = sadd.s32 %s155, 1
    %p159 = scmp.eq.s32.totalorder %s12, 1
    %p160 = scmp.ne.s32.totalorder %s155, %s157
    %p161 = scmp.eq.s32.totalorder %s12, 0
    %p162 = por %p160, %p161
    %p163 = scmp.ne.s32.totalorder %s155, %s157
    %p164 = scmp.eq.s32.totalorder %s17, 1
    %p165 = por %p163, %p164
    %p166 = scmp.ne.s32.totalorder %s157, %s158
    %p167 = scmp.eq.s32.totalorder %s17, 0
    %p168 = por %p166, %p167
    %p169 = scmp.ne.s32.totalorder %s157, %s158
    %p170 = scmp.eq.s32.totalorder %s18, 1
    %p171 = por %p169, %p170
    %p173 = scmp.ne.s32.totalorder %s158, %s172
    %p174 = scmp.eq.s32.totalorder %s18, 0
    %p175 = por %p173, %p174
    %s176 = ssub.s32 %s19, %s31
    %s177 = ssub.s32 %s20, %s27
    %s178 = sor.u32 %s176, %s177
    %p179 = scmp.eq.s32.totalorder %s178, 0
    %s181 = sadd.s32 %s180, 1
    %s182 = scalar_select %p179, %s180, %s181
    %p185 = pneg %p179
    %p186 = scmp.eq.s32.totalorder %s12, 1
    %p187 = por %p185, %p186
    %p188 = scmp.ne.s32.totalorder %s180, %s183
    %p189 = scmp.eq.s32.totalorder %s12, 0
    %p190 = por %p188, %p189
    %p191 = scmp.ne.s32.totalorder %s180, %s183
    %p192 = scmp.eq.s32.totalorder %s17, 1
    %p193 = por %p191, %p192
    %p194 = scmp.ne.s32.totalorder %s183, %s184
    %p195 = scmp.eq.s32.totalorder %s17, 0
    %p196 = por %p194, %p195
    %p197 = scmp.ne.s32.totalorder %s183, %s184
    %p198 = scmp.eq.s32.totalorder %s18, 1
    %p199 = por %p197, %p198
    %p201 = scmp.ne.s32.totalorder %s184, %s200
    %p202 = scmp.eq.s32.totalorder %s18, 0
    %p203 = por %p201, %p202
    %p204 = scmp.le.s32.totalorder 1, %s12
    %p205 = scmp.lt.s32.totalorder %s12, 3
    %p206 = pnand %p204, %p205
    %p207 = pneg %p206
    // Predicated region
    $region9: #{segmenter_forward.1} parent=5 // pred_check
      _
    $region10: #{segmenter_forward.1} parent=5 // pred_check_branch
      %209 = sbr.rel (%p206) target = $region12
    $region11: #{segmenter_forward.1} parent=5 // pred_region
      %s210 = ssub.s32 %s12, 1
      // Predicated region
      $region13: #{segmenter_forward.1} parent=11 // pred_check
        %p211 = pneg %p105
      $region14: #{segmenter_forward.1} parent=11 // pred_check_branch
        %213 = sbr.rel (%p211) target = $region16
      $region15: #{segmenter_forward.1} parent=11 // pred_region
        _
      $region16: #{segmenter_forward.1} parent=11 // pred_fallthru
        _
      // Predicated region
      $region17: #{segmenter_forward.1} parent=11 // pred_check
        %p214 = pneg %p126
      $region18: #{segmenter_forward.1} parent=11 // pred_check_branch
        %216 = sbr.rel (%p214) target = $region20
      $region19: #{segmenter_forward.1} parent=11 // pred_region
        _
      $region20: #{segmenter_forward.1} parent=11 // pred_fallthru
        _
      // Predicated region
      $region21: #{segmenter_forward.1} parent=11 // pred_check
        %p217 = pneg %p147
      $region22: #{segmenter_forward.1} parent=11 // pred_check_branch
        %219 = sbr.rel (%p217) target = $region24
      $region23: #{segmenter_forward.1} parent=11 // pred_region
        _
      $region24: #{segmenter_forward.1} parent=11 // pred_fallthru
        _
      // Predicated region
      $region25: #{segmenter_forward.1} parent=11 // pred_check
        %p220 = pneg %p168
      $region26: #{segmenter_forward.1} parent=11 // pred_check_branch
        %222 = sbr.rel (%p220) target = $region28
      $region27: #{segmenter_forward.1} parent=11 // pred_region
        _
      $region28: #{segmenter_forward.1} parent=11 // pred_fallthru
        _
    $region12: #{segmenter_forward.1} parent=5 // pred_fallthru
      _
    %p223 = scmp.lt.s32.totalorder %s12, 2
    // Predicated region
    $region29: #{segmenter_forward.1} parent=5 // pred_check
      %p224 = pneg %p223
    $region30: #{segmenter_forward.1} parent=5 // pred_check_branch
      %226 = sbr.rel (%p224) target = $region32
    $region31: #{segmenter_forward.1} parent=5 // pred_region
      // Predicated region
      $region33: #{segmenter_forward.1} parent=31 // pred_check
        %p227 = pneg %p46
      $region34: #{segmenter_forward.1} parent=31 // pred_check_branch
        %229 = sbr.rel (%p227) target = $region36
      $region35: #{segmenter_forward.1} parent=31 // pred_region
        %s230 = smul.u32 3, %s20
        %s231 = ssub.s32 4, %s230
        %p232 = scmp.lt.s32.totalorder %s231, 3
        %s233 = scalar_select %p232, %s231, 3
        %s234 = smul.u32 4, %s233
        %p235 = scmp.lt.s32.totalorder %s19, 1
        %s236 = scalar_select %p235, %s19, 1
        %p237 = scmp.lt.s32.totalorder %s230, 3
        %s238 = scalar_select %p237, %s230, 3
        %s239 = smul.addr %s236, 4
        %s240 = sadd.s32 %s238, %s239
        %s241 = smul.addr %s240, 4
        %s242 = scalar_lea.vmem %s0, %s241
        %s243 = smul.u32 3, %s20
        %s244 = ssub.s32 4, %s243
        %p245 = scmp.lt.s32.totalorder %s244, 3
        %s246 = scalar_select %p245, %s244, 3
        %s247 = smul.u32 4, %s246
      $region36: #{segmenter_forward.1} parent=31 // pred_fallthru
        _
      // Predicated region
      $region37: #{segmenter_forward.1} parent=31 // pred_check
        %p248 = pneg %p78
      $region38: #{segmenter_forward.1} parent=31 // pred_check_branch
        %250 = sbr.rel (%p248) target = $region40
      $region39: #{segmenter_forward.1} parent=31 // pred_region
        %s251 = sadd.s32 %s20, 1
        %s252 = smul.u32 %s251, 3
        %p253 = scmp.lt.s32.totalorder %s19, 1
        %s254 = scalar_select %p253, %s19, 1
        %p255 = scmp.lt.s32.totalorder %s252, 3
        %s256 = scalar_select %p255, %s252, 3
        %s257 = smul.addr %s254, 4
        %s258 = sadd.s32 %s256, %s257
        %s259 = smul.addr %s258, 4
        %s260 = scalar_lea.vmem %s1, %s259
        %s261 = sadd.s32 %s20, 1
        %s262 = smul.u32 %s261, 3
      $region40: #{segmenter_forward.1} parent=31 // pred_fallthru
        _
    $region32: #{segmenter_forward.1} parent=5 // pred_fallthru
      _
    %p263 = scmp.le.s32.totalorder 1, %s12
    %p264 = scmp.lt.s32.totalorder %s12, 3
    %p265 = pnand %p263, %p264
    %p266 = pneg %p265
    // Predicated region
    $region41: #{segmenter_forward.1} parent=5 // pred_check
      _
    $region42: #{segmenter_forward.1} parent=5 // pred_check_branch
      %268 = sbr.rel (%p265) target = $region44
    $region43: #{segmenter_forward.1} parent=5 // pred_region
      %s269 = ssub.s32 %s12, 1
      %s270 = smul.u32 3, %s22
      %s271 = ssub.s32 4, %s270
      %p272 = scmp.lt.s32.totalorder %s271, 3
      %s273 = scalar_select %p272, %s271, 3
      %s274 = smul.u32 4, %s273
      %p275 = scmp.lt.s32.totalorder %s21, 1
      %s276 = scalar_select %p275, %s21, 1
      %p277 = scmp.lt.s32.totalorder %s270, 3
      %s278 = scalar_select %p277, %s270, 3
      %s279 = smul.addr %s276, 4
      %s280 = sadd.s32 %s278, %s279
      %s281 = smul.addr %s280, 4
      %s282 = scalar_lea.vmem %s0, %s281
      %p283 = pneg %p52
      %p284 = pneg %p49
      %s285 = sadd.s32 %s22, 1
      %s286 = smul.u32 %s285, 3
      %p287 = scmp.lt.s32.totalorder %s21, 1
      %s288 = scalar_select %p287, %s21, 1
      %p289 = scmp.lt.s32.totalorder %s286, 3
      %s290 = scalar_select %p289, %s286, 3
      %s291 = smul.addr %s288, 4
      %s292 = sadd.s32 %s290, %s291
      %s293 = smul.addr %s292, 4
      %s294 = scalar_lea.vmem %s1, %s293
      %p295 = pneg %p84
      %p296 = pneg %p81
      %p297 = pneg %p105
      %p298 = pneg %p102
      %p299 = pneg %p126
      %p300 = pneg %p123
      %p301 = pneg %p147
      %p302 = pneg %p144
      %p303 = pneg %p168
      %p304 = pneg %p165
      %p305 = pneg %p196
      %p306 = pneg %p193
      %s307 = smul.u32 3, %s22
      %p308 = scmp.lt.s32.totalorder %s21, 1
      %s309 = scalar_select %p308, %s21, 1
      %p310 = scmp.lt.s32.totalorder %s307, 2
      %s311 = scalar_select %p310, %s307, 2
      %s312 = smul.addr %s309, 3
      %s313 = sadd.s32 %s311, %s312
      %s314 = smul.addr %s313, 8
      %s315 = scalar_lea.vmem %s6, %s314
      %s316 = smul.u32 3, %s22
      %s317 = ssub.s32 4, %s316
      %p318 = scmp.lt.s32.totalorder %s317, 3
      %s319 = scalar_select %p318, %s317, 3
      %s320 = smul.u32 4, %s319
      %p321 = scmp.lt.s32.totalorder %s21, 1
      %s322 = scalar_select %p321, %s21, 1
      %p323 = scmp.lt.s32.totalorder %s316, 3
      %s324 = scalar_select %p323, %s316, 3
      %s325 = smul.addr %s322, 4
      %s326 = sadd.s32 %s324, %s325
      %s327 = smul.addr %s326, 4
      %s328 = scalar_lea.vmem %s0, %s327
      %s329 = smul.u32 3, %s22
      %s330 = ssub.s32 4, %s329
      %p331 = scmp.lt.s32.totalorder %s330, 3
      %s332 = scalar_select %p331, %s330, 3
      %s333 = smul.u32 4, %s332
      %s334 = sadd.s32 %s22, 1
      %s335 = smul.u32 %s334, 3
      %p336 = scmp.lt.s32.totalorder %s21, 1
      %s337 = scalar_select %p336, %s21, 1
      %p338 = scmp.lt.s32.totalorder %s335, 3
      %s339 = scalar_select %p338, %s335, 3
      %s340 = smul.addr %s337, 4
      %s341 = sadd.s32 %s339, %s340
      %s342 = smul.addr %s341, 4
      %s343 = scalar_lea.vmem %s1, %s342
      %s344 = sadd.s32 %s22, 1
      %s345 = smul.u32 %s344, 3
      %s346 = smul.u32 3, %s22
      %p347 = scmp.lt.s32.totalorder %s21, 1
      %s348 = scalar_select %p347, %s21, 1
      %p349 = scmp.lt.s32.totalorder %s346, 2
      %s350 = scalar_select %p349, %s346, 2
      %s351 = smul.addr %s348, 3
      %s352 = sadd.s32 %s350, %s351
      %s353 = smul.addr %s352, 8
      %s354 = scalar_lea.vmem %s6, %s353
      %s355 = smul.u32 3, %s22
      %v356 = vld [vmem:[%s328] sm:$0xff]
      %v357 = vld [vmem:[%s328 + $0x8] sm:$0xf]
      %v358 = vld [vmem:[%s343] sm:$0xf]
      %v361 = vunpack.c.l.b16 %v356
      %v362 = vunpack.c.h.b16 %v356
      %v363 = vunpack.c.l.b16 %v357
      %v364 = vpack.c.b16 %v361, %v361
      %v365 = vpack.c.b16 %v362, %v362
      %v366 = vpack.c.b16 %v363, %v363
      %v370 = vunpack.c.l.bf16 %v364
      %v371 = vunpack.c.l.bf16 %v365
      %v372 = vunpack.c.l.bf16 %v366
      %v373 = vunpack.c.l.bf16 %v358
      %378 = vrot.lane.b32.xlu0 %v370, 127
      %v379 = vpop.permute.xlu0 %378
      %380 = vrot.lane.b32.xlu0 %v371, 127
      %v381 = vpop.permute.xlu0 %380
      %382 = vrot.lane.b32.xlu0 %v372, 127
      %v383 = vpop.permute.xlu0 %382
      %384 = vrot.lane.b32.xlu0 %v373, 127
      %v385 = vpop.permute.xlu0 %384
      %vm386 = vcmask 1039360
      %v387 = vsel %vm386, %v379, %v381
      %v388 = vsel %vm386, %v381, %v383
      %v389 = vsel %vm386, %v383, %v385
      %393 = vrot.lane.b32.xlu0 %v370, 126
      %v394 = vpop.permute.xlu0 %393
      %395 = vrot.lane.b32.xlu0 %v371, 126
      %v396 = vpop.permute.xlu0 %395
      %397 = vrot.lane.b32.xlu0 %v372, 126
      %v398 = vpop.permute.xlu0 %397
      %399 = vrot.lane.b32.xlu0 %v373, 126
      %v400 = vpop.permute.xlu0 %399
      %vm401 = vcmask 1031168
      %v402 = vsel %vm401, %v394, %v396
      %v403 = vsel %vm401, %v396, %v398
      %v404 = vsel %vm401, %v398, %v400
      %408 = vrot.lane.b32.xlu0 %v370, 110
      %v409 = vpop.permute.xlu0 %408
      %410 = vrot.lane.b32.xlu0 %v371, 110
      %v411 = vpop.permute.xlu0 %410
      %412 = vrot.lane.b32.xlu0 %v372, 110
      %v413 = vpop.permute.xlu0 %412
      %414 = vrot.lane.b32.xlu0 %v373, 110
      %v415 = vpop.permute.xlu0 %414
      %vm416 = vcmask 900096
      %v417 = vsel %vm416, %v409, %v411
      %v418 = vsel %vm416, %v411, %v413
      %v419 = vsel %vm416, %v413, %v415
      %423 = vrot.lane.b32.xlu0 %v370, 109
      %v424 = vpop.permute.xlu0 %423
      %425 = vrot.lane.b32.xlu0 %v371, 109
      %v426 = vpop.permute.xlu0 %425
      %427 = vrot.lane.b32.xlu0 %v372, 109
      %v428 = vpop.permute.xlu0 %427
      %429 = vrot.lane.b32.xlu0 %v373, 109
      %v430 = vpop.permute.xlu0 %429
      %vm431 = vcmask 891904
      %v432 = vsel %vm431, %v424, %v426
      %v433 = vsel %vm431, %v426, %v428
      %v434 = vsel %vm431, %v428, %v430
      %438 = vrot.lane.b32.xlu0 %v370, 108
      %v439 = vpop.permute.xlu0 %438
      %440 = vrot.lane.b32.xlu0 %v371, 108
      %v441 = vpop.permute.xlu0 %440
      %442 = vrot.lane.b32.xlu0 %v372, 108
      %v443 = vpop.permute.xlu0 %442
      %444 = vrot.lane.b32.xlu0 %v373, 108
      %v445 = vpop.permute.xlu0 %444
      %vm446 = vcmask 883712
      %v447 = vsel %vm446, %v439, %v441
      %v448 = vsel %vm446, %v441, %v443
      %v449 = vsel %vm446, %v443, %v445
      %453 = vrot.lane.b32.xlu0 %v370, 92
      %v454 = vpop.permute.xlu0 %453
      %455 = vrot.lane.b32.xlu0 %v371, 92
      %v456 = vpop.permute.xlu0 %455
      %457 = vrot.lane.b32.xlu0 %v372, 92
      %v458 = vpop.permute.xlu0 %457
      %459 = vrot.lane.b32.xlu0 %v373, 92
      %v460 = vpop.permute.xlu0 %459
      %vm461 = vcmask 752640
      %v462 = vsel %vm461, %v454, %v456
      %v463 = vsel %vm461, %v456, %v458
      %v464 = vsel %vm461, %v458, %v460
      %468 = vrot.lane.b32.xlu0 %v370, 91
      %v469 = vpop.permute.xlu0 %468
      %470 = vrot.lane.b32.xlu0 %v371, 91
      %v471 = vpop.permute.xlu0 %470
      %472 = vrot.lane.b32.xlu0 %v372, 91
      %v473 = vpop.permute.xlu0 %472
      %474 = vrot.lane.b32.xlu0 %v373, 91
      %v475 = vpop.permute.xlu0 %474
      %vm476 = vcmask 744448
      %v477 = vsel %vm476, %v469, %v471
      %v478 = vsel %vm476, %v471, %v473
      %v479 = vsel %vm476, %v473, %v475
      %483 = vrot.lane.b32.xlu0 %v370, 90
      %v484 = vpop.permute.xlu0 %483
      %485 = vrot.lane.b32.xlu0 %v371, 90
      %v486 = vpop.permute.xlu0 %485
      %487 = vrot.lane.b32.xlu0 %v372, 90
      %v488 = vpop.permute.xlu0 %487
      %489 = vrot.lane.b32.xlu0 %v373, 90
      %v490 = vpop.permute.xlu0 %489
      %vm491 = vcmask 736256
      %v492 = vsel %vm491, %v484, %v486
      %v493 = vsel %vm491, %v486, %v488
      %v494 = vsel %vm491, %v488, %v490
      %v498 = vld [vmem:[%s2] sm:$0xff]
      %v499 = vld [vmem:[%s3] sm:$0xff]
      %501 = vset.pattern.permute.xlu0 0
      %502 = vperm.xlu0 %501, %v499
      %v503 = vpop.permute.xlu0 %502
      %vm505 = vcmask 588800
      %v507 = vsel %vm505, %v498, 0
      %509 = vmatpush.msra.mxu0 0.0
      %510 = vmatpush.msra.mxu0 0.0
      %511 = vmatpush.msra.mxu0 0.0
      %512 = vmatpush.msra.mxu0 0.0
      %513 = vmatpush.msra.mxu0 0.0
      %514 = vmatpush.msra.mxu0 0.0
      %515 = vmatpush.msra.mxu0 0.0
      %516 = vmatpush.msra.mxu0 %v492
      %517 = vmatpush.msra.mxu0 %v477
      %518 = vmatpush.msra.mxu0 %v462
      %519 = vmatpush.msra.mxu0 %v447
      %520 = vmatpush.msra.mxu0 %v432
      %521 = vmatpush.msra.mxu0 %v417
      %522 = vmatpush.msra.mxu0 %v402
      %523 = vmatpush.msra.mxu0 %v387
      %524 = vmatpush.msra.mxu0 %v370
      %525 = vmatmul.f32.gmra.mxu0 %v507
      %v526 = vpop.f32.mrf.mxu0
      %v527 = vadd.f32 %v503, %v526
      %528 = vdwg.mxu0
      %529 = vmatpush.msra.mxu0 0.0
      %530 = vmatpush.msra.mxu0 0.0
      %531 = vmatpush.msra.mxu0 0.0
      %532 = vmatpush.msra.mxu0 0.0
      %533 = vmatpush.msra.mxu0 0.0
      %534 = vmatpush.msra.mxu0 0.0
      %535 = vmatpush.msra.mxu0 0.0
      %536 = vmatpush.msra.mxu0 %v493
      %537 = vmatpush.msra.mxu0 %v478
      %538 = vmatpush.msra.mxu0 %v463
      %539 = vmatpush.msra.mxu0 %v448
      %540 = vmatpush.msra.mxu0 %v433
      %541 = vmatpush.msra.mxu0 %v418
      %542 = vmatpush.msra.mxu0 %v403
      %543 = vmatpush.msra.mxu0 %v388
      %544 = vmatpush.msra.mxu0 %v371
      %545 = vmatmul.f32.gmra.mxu0 %v507
      %v546 = vpop.f32.mrf.mxu0
      %v547 = vadd.f32 %v503, %v546
      %548 = vdwg.mxu0
      %549 = vmatpush.msra.mxu0 0.0
      %550 = vmatpush.msra.mxu0 0.0
      %551 = vmatpush.msra.mxu0 0.0
      %552 = vmatpush.msra.mxu0 0.0
      %553 = vmatpush.msra.mxu0 0.0
      %554 = vmatpush.msra.mxu0 0.0
      %555 = vmatpush.msra.mxu0 0.0
      %556 = vmatpush.msra.mxu0 %v494
      %557 = vmatpush.msra.mxu0 %v479
      %558 = vmatpush.msra.mxu0 %v464
      %559 = vmatpush.msra.mxu0 %v449
      %560 = vmatpush.msra.mxu0 %v434
      %561 = vmatpush.msra.mxu0 %v419
      %562 = vmatpush.msra.mxu0 %v404
      %563 = vmatpush.msra.mxu0 %v389
      %564 = vmatpush.msra.mxu0 %v372
      %565 = vmatmul.f32.gmra.mxu0 %v507
      %v566 = vpop.f32.mrf.mxu0
      %v567 = vadd.f32 %v503, %v566
      %568 = vdwg.mxu0
      %v569 = vmax.f32 %v527, 0.0
      %v570 = vmax.f32 %v547, 0.0
      %v571 = vmax.f32 %v567, 0.0
      %v572 = vld [vmem:[%s4] sm:$0xff]
      %v573 = vld [vmem:[%s5] sm:$0xff]
      %575 = vset.pattern.permute.xlu0 0
      %576 = vperm.xlu0 %575, %v573
      %v577 = vpop.permute.xlu0 %576
      %vm579 = vcmask 64512
      %v581 = vsel %vm579, %v572, 0
      %583 = vmatpush.msra.mxu0 0.0
      %584 = vmatpush.msra.mxu0 0.0
      %585 = vmatpush.msra.mxu0 0.0
      %586 = vmatpush.msra.mxu0 0.0
      %587 = vmatpush.msra.mxu0 0.0
      %588 = vmatpush.msra.mxu0 0.0
      %589 = vmatpush.msra.mxu0 0.0
      %590 = vmatpush.msra.mxu0 0.0
      %591 = vmatpush.msra.mxu0 0.0
      %592 = vmatpush.msra.mxu0 0.0
      %593 = vmatpush.msra.mxu0 0.0
      %594 = vmatpush.msra.mxu0 0.0
      %595 = vmatpush.msra.mxu0 0.0
      %596 = vmatpush.msra.mxu0 0.0
      %597 = vmatpush.msra.mxu0 0.0
      %598 = vmatpush.msra.mxu0 %v569
      %599 = vmatmul.f32.gmra.mxu0 %v581
      %v600 = vpop.f32.mrf.mxu0
      %v601 = vadd.f32 %v577, %v600
      %602 = vdwg.mxu0
      %603 = vmatpush.msra.mxu0 0.0
      %604 = vmatpush.msra.mxu0 0.0
      %605 = vmatpush.msra.mxu0 0.0
      %606 = vmatpush.msra.mxu0 0.0
      %607 = vmatpush.msra.mxu0 0.0
      %608 = vmatpush.msra.mxu0 0.0
      %609 = vmatpush.msra.mxu0 0.0
      %610 = vmatpush.msra.mxu0 0.0
      %611 = vmatpush.msra.mxu0 0.0
      %612 = vmatpush.msra.mxu0 0.0
      %613 = vmatpush.msra.mxu0 0.0
      %614 = vmatpush.msra.mxu0 0.0
      %615 = vmatpush.msra.mxu0 0.0
      %616 = vmatpush.msra.mxu0 0.0
      %617 = vmatpush.msra.mxu0 0.0
      %618 = vmatpush.msra.mxu0 %v570
      %619 = vmatmul.f32.gmra.mxu0 %v581
      %v620 = vpop.f32.mrf.mxu0
      %v621 = vadd.f32 %v577, %v620
      %622 = vdwg.mxu0
      %623 = vmatpush.msra.mxu0 0.0
      %624 = vmatpush.msra.mxu0 0.0
      %625 = vmatpush.msra.mxu0 0.0
      %626 = vmatpush.msra.mxu0 0.0
      %627 = vmatpush.msra.mxu0 0.0
      %628 = vmatpush.msra.mxu0 0.0
      %629 = vmatpush.msra.mxu0 0.0
      %630 = vmatpush.msra.mxu0 0.0
      %631 = vmatpush.msra.mxu0 0.0
      %632 = vmatpush.msra.mxu0 0.0
      %633 = vmatpush.msra.mxu0 0.0
      %634 = vmatpush.msra.mxu0 0.0
      %635 = vmatpush.msra.mxu0 0.0
      %636 = vmatpush.msra.mxu0 0.0
      %637 = vmatpush.msra.mxu0 0.0
      %638 = vmatpush.msra.mxu0 %v571
      %639 = vmatmul.f32.gmra.mxu0 %v581
      %v640 = vpop.f32.mrf.mxu0
      %v641 = vadd.f32 %v577, %v640
      %642 = vdwg.mxu0
      %643 = vst [vmem:[%s354] sm:$0xff] %v601
      %644 = vst [vmem:[%s354 + $0x8] sm:$0xff] %v621
      %645 = vst [vmem:[%s354 + $0x10] sm:$0xff] %v641
      %s646 = smul.u32 3, %s22
      %p647 = scmp.lt.s32.totalorder %s21, 1
      %s648 = scalar_select %p647, %s21, 1
      %p649 = scmp.lt.s32.totalorder %s646, 2
      %s650 = scalar_select %p649, %s646, 2
      %s651 = smul.addr %s648, 3
      %s652 = sadd.s32 %s650, %s651
      %s653 = smul.addr %s652, 8
      %s654 = scalar_lea.vmem %s6, %s653
      // Predicated region
      $region45: #{segmenter_forward.1} parent=43 // pred_check
        %p655 = pneg %p193
      $region46: #{segmenter_forward.1} parent=43 // pred_check_branch
        %657 = sbr.rel (%p655) target = $region48
      $region47: #{segmenter_forward.1} parent=43 // pred_region
        %s658 = smul.u32 3, %s22
      $region48: #{segmenter_forward.1} parent=43 // pred_fallthru
        _
    $region44: #{segmenter_forward.1} parent=5 // pred_fallthru
      _
    %p659 = scmp.le.s32.totalorder 2, %s12
    // Predicated region
    $region49: #{segmenter_forward.1} parent=5 // pred_check
      %p660 = pneg %p659
    $region50: #{segmenter_forward.1} parent=5 // pred_check_branch
      %662 = sbr.rel (%p660) target = $region52
    $region51: #{segmenter_forward.1} parent=5 // pred_region
      %s663 = ssub.s32 %s12, 2
      // Predicated region
      $region53: #{segmenter_forward.1} parent=51 // pred_check
        %p664 = pneg %p199
      $region54: #{segmenter_forward.1} parent=51 // pred_check_branch
        %666 = sbr.rel (%p664) target = $region56
      $region55: #{segmenter_forward.1} parent=51 // pred_region
        %s667 = smul.u32 3, %s24
        %p668 = scmp.lt.s32.totalorder %s23, 1
        %s669 = scalar_select %p668, %s23, 1
        %p670 = scmp.lt.s32.totalorder %s667, 2
        %s671 = scalar_select %p670, %s667, 2
        %s672 = smul.addr %s669, 3
        %s673 = sadd.s32 %s671, %s672
        %s674 = smul.addr %s673, 8
        %s675 = scalar_lea.vmem %s6, %s674
      $region56: #{segmenter_forward.1} parent=51 // pred_fallthru
        _
    $region52: #{segmenter_forward.1} parent=5 // pred_fallthru
      _
  $region6: #{segmenter_forward.1} parent=0 // loop_footer
    %s16 = sadd.s32 1, %s12
  $region7: #{segmenter_forward.1} parent=0 // loop_footer_branch
    %11 = sbr.rel target = $region3
  $region8: #{segmenter_forward.1} parent=0 // loop_exit
    _

</llo_original>
